<compile_context>
chip_gen: v5e
topology: v5e:2x2
jax: 0.10.0
libtpu: 0.0.40
codegen_flags: <defaults>
</compile_context>

<pallas_src>
import functools
import math

import jax
import jax.numpy as jnp
from jax.experimental import pallas as pl
from jax.experimental.pallas import tpu as pltpu

_PRED_CLAMP_MIN = 1e-7
_NEG_LOG_ONEHOT_MIN = -math.log(1e-4)   # -log(1e-4) ~= 9.2103


def _mae_rce_kernel(pred_ref, labels_ref, partial_ref, *, batch, alpha, beta):
    i = pl.program_id(0)

    logits = pred_ref[...].astype(jnp.float32)        # (TB, C)
    labels = labels_ref[...]                          # (TB, 1) int32
    tb, c = logits.shape

    # Rows past the true batch (partial last block) contain garbage. Sanitize
    # BEFORE exp so no inf/NaN can leak through the *0 mask afterwards.
    row_iota = jax.lax.broadcasted_iota(jnp.int32, (tb, 1), 0)
    row_valid = (i * tb + row_iota) < batch            # (TB, 1) bool
    logits = jnp.where(row_valid, logits, 0.0)

    # softmax(pred, dim=1): EUP reciprocal + one Newton step (near-exact,
    # two tiny VPU ops on a (TB,1) vector).
    m = jnp.max(logits, axis=1, keepdims=True)
    e = jnp.exp(logits - m)
    s = jnp.sum(e, axis=1, keepdims=True)
    inv = pl.reciprocal(s, approx=True)
    inv = inv * (2.0 - s * inv)
    p = e * inv                                        # (TB, C)

    # In-kernel one-hot mask (replaces a one-hot HBM stream).
    class_iota = jax.lax.broadcasted_iota(jnp.int32, (tb, c), 1)
    onehot = class_iota == labels                      # (TB, C) bool

    p_label = jnp.sum(jnp.where(onehot, p, 0.0), axis=1, keepdims=True)   # (TB,1)

    # MAE: 1 - sum(onehot * p, dim=1) = 1 - p[label]
    mae_row = 1.0 - p_label

    # RCE fold: -sum(clamp(p,1e-7,1) * log(clamp(onehot,1e-4,1)), dim=1)
    #         = -log(1e-4) * (rowsum(max(p,1e-7)) - max(p[label],1e-7))
    # (upper clamp at 1.0 is a no-op for softmax outputs)
    p_cl_sum = jnp.sum(jnp.maximum(p, _PRED_CLAMP_MIN), axis=1, keepdims=True)
    rce_row = _NEG_LOG_ONEHOT_MIN * (p_cl_sum - jnp.maximum(p_label, _PRED_CLAMP_MIN))

    combined = (alpha * mae_row + beta * rce_row) * row_valid.astype(jnp.float32)
    partial_ref[0, 0] = jnp.sum(combined)


def mae_and_rce(pred, labels, *, num_classes, alpha, beta,
                target_block_bytes=2 * 1024 * 1024):
    """Pallas implementation of MAEandRCE.forward — returns the scalar loss."""
    b, c = pred.shape
    assert c == num_classes

    dsize = jnp.dtype(pred.dtype).itemsize
    gran = {4: 8, 2: 16, 1: 32}.get(dsize, 8)          # sublane packing granularity

    # Batch tile sized by bytes of the f32 intermediates (~2 MiB per block):
    # big enough for ~85% HBM roofline, small enough for v7x's 64 MiB VMEM.
    tb = max(gran, (target_block_bytes // (c * 4)) // gran * gran)
    b_ceil = ((b + gran - 1) // gran) * gran
    tb = min(tb, b_ceil)
    num_tiles = pl.cdiv(b, tb)                         # partial last block, no jnp.pad

    labels_2d = labels.astype(jnp.int32).reshape(b, 1)

    # VMEM budget from the actual block: double-buffered inputs + f32 temps.
    block_in_bytes = tb * c * dsize + tb * 4
    vmem_limit = int(min(max(32 << 20, 2 * block_in_bytes + 8 * tb * c * 4 + (2 << 20)),
                         64 << 20))

    kernel = functools.partial(
        _mae_rce_kernel, batch=b, alpha=float(alpha), beta=float(beta))

    partials = pl.pallas_call(
        kernel,
        grid=(num_tiles,),
        in_specs=[
            pl.BlockSpec((tb, c), lambda i: (i, 0)),   # logits tile (native dtype)
            pl.BlockSpec((tb, 1), lambda i: (i, 0)),   # int32 labels tile
        ],
        out_specs=pl.BlockSpec((1, 1), lambda i: (i, 0),
                               memory_space=pltpu.MemorySpace.SMEM),
        out_shape=jax.ShapeDtypeStruct((num_tiles, 1), jnp.float32),
        compiler_params=pltpu.CompilerParams(
            dimension_semantics=("parallel",),         # megacore shards batch tiles
            vmem_limit_bytes=vmem_limit,
        ),
    )(pred, labels_2d)

    return jnp.sum(partials) / b


def _reference(pred, labels, *, num_classes, alpha, beta):
    p = jax.nn.softmax(pred.astype(jnp.float32), axis=1)
    onehot = jax.nn.one_hot(labels, num_classes, dtype=jnp.float32)
    mae = 1.0 - jnp.sum(onehot * p, axis=1)
    p_cl = jnp.clip(p, 1e-7, 1.0)
    oh_cl = jnp.clip(onehot, 1e-4, 1.0)
    rce = -jnp.sum(p_cl * jnp.log(oh_cl), axis=1)
    return alpha * jnp.mean(mae) + beta * jnp.mean(rce)


if __name__ == "__main__":
    key = jax.random.PRNGKey(0)
    batch, num_classes = 37, 16          # non-multiple batch exercises the partial block
    alpha, beta = 1.0, 1.0

    k1, k2 = jax.random.split(key)
    pred = jax.random.normal(k1, (batch, num_classes), dtype=jnp.float32)
    labels = jax.random.randint(k2, (batch,), 0, num_classes)

    loss = mae_and_rce(pred, labels, num_classes=num_classes,
                       alpha=alpha, beta=beta)
    jax.block_until_ready(loss)

    ref = _reference(pred, labels, num_classes=num_classes, alpha=alpha, beta=beta)
    assert abs(float(loss) - float(ref)) <= 1e-4 * (1.0 + abs(float(ref))), (
        float(loss), float(ref))

    print("KERNEL_OK")
</pallas_src>

<mosaic_0001>
module attributes {stable_mosaic.version = 11 : i64} {
  func.func @_mae_rce_kernel(%arg0: i32, %arg1: memref<40x16xf32, #tpu.memory_space<vmem>>, %arg2: memref<40x1xi32, #tpu.memory_space<vmem>>, %arg3: memref<1x1xf32, #tpu.memory_space<smem>>) attributes {dimension_semantics = [#tpu.dimension_semantics<parallel>], iteration_bounds = array<i64: 1>, scalar_prefetch = 0 : i64, scratch_operands = 0 : i64, tpu.core_type = #tpu.core_type<tc>, window_params = [{transform_indices = @transform_0, window_bounds = array<i64: 40, 16>}, {transform_indices = @transform_1, window_bounds = array<i64: 40, 1>}, {transform_indices = @transform_2, window_bounds = array<i64: 1, 1>}]} {
    %c0 = arith.constant 0 : index
    %c0_0 = arith.constant 0 : index
    %0 = vector.load %arg1[%c0, %c0_0] : memref<40x16xf32, #tpu.memory_space<vmem>>, vector<40x16xf32>
    %c0_1 = arith.constant 0 : index
    %c0_2 = arith.constant 0 : index
    %1 = vector.load %arg2[%c0_1, %c0_2] : memref<40x1xi32, #tpu.memory_space<vmem>>, vector<40x1xi32>
    %2 = tpu.iota {dimensions = array<i32: 0>} : vector<40x1xi32>
    %c40_i32 = arith.constant 40 : i32
    %3 = arith.muli %arg0, %c40_i32 : i32
    %4 = vector.broadcast %3 : i32 to vector<40x1xi32>
    %5 = arith.addi %4, %2 : vector<40x1xi32>
    %c37_i32 = arith.constant 37 : i32
    %6 = vector.broadcast %c37_i32 : i32 to vector<40x1xi32>
    %7 = arith.cmpi slt, %5, %6 : vector<40x1xi32>
    %cst = arith.constant 0.000000e+00 : f32
    %8 = vector.shape_cast %7 : vector<40x1xi1> to vector<40x1xi1>
    %9 = vector.broadcast %8 : vector<40x1xi1> to vector<40x16xi1>
    %10 = vector.broadcast %cst : f32 to vector<40x16xf32>
    %11 = arith.select %9, %0, %10 : vector<40x16xi1>, vector<40x16xf32>
    %cst_3 = arith.constant dense<0xFF800000> : vector<40xf32>
    %12 = vector.multi_reduction <maximumf>, %11, %cst_3 [1] : vector<40x16xf32> to vector<40xf32>
    %13 = vector.shape_cast %12 : vector<40xf32> to vector<40x1xf32>
    %14 = vector.broadcast %13 : vector<40x1xf32> to vector<40x16xf32>
    %15 = arith.subf %11, %14 : vector<40x16xf32>
    %16 = math.exp %15 : vector<40x16xf32>
    %cst_4 = arith.constant dense<0.000000e+00> : vector<40xf32>
    %17 = vector.multi_reduction <add>, %16, %cst_4 [1] : vector<40x16xf32> to vector<40xf32>
    %18 = vector.shape_cast %17 : vector<40xf32> to vector<40x1xf32>
    %19 = tpu.reciprocal %18 {approx = true} : vector<40x1xf32> -> vector<40x1xf32>
    %20 = arith.mulf %18, %19 : vector<40x1xf32>
    %cst_5 = arith.constant 2.000000e+00 : f32
    %21 = vector.broadcast %cst_5 : f32 to vector<40x1xf32>
    %22 = arith.subf %21, %20 : vector<40x1xf32>
    %23 = arith.mulf %19, %22 : vector<40x1xf32>
    %24 = vector.broadcast %23 : vector<40x1xf32> to vector<40x16xf32>
    %25 = arith.mulf %16, %24 : vector<40x16xf32>
    %26 = tpu.iota {dimensions = array<i32: 1>} : vector<40x16xi32>
    %27 = vector.broadcast %1 : vector<40x1xi32> to vector<40x16xi32>
    %28 = arith.cmpi eq, %26, %27 : vector<40x16xi32>
    %cst_6 = arith.constant 0.000000e+00 : f32
    %29 = vector.broadcast %cst_6 : f32 to vector<40x16xf32>
    %30 = arith.select %28, %25, %29 : vector<40x16xi1>, vector<40x16xf32>
    %cst_7 = arith.constant dense<0.000000e+00> : vector<40xf32>
    %31 = vector.multi_reduction <add>, %30, %cst_7 [1] : vector<40x16xf32> to vector<40xf32>
    %32 = vector.shape_cast %31 : vector<40xf32> to vector<40x1xf32>
    %cst_8 = arith.constant 1.000000e+00 : f32
    %33 = vector.broadcast %cst_8 : f32 to vector<40x1xf32>
    %34 = arith.subf %33, %32 : vector<40x1xf32>
    %cst_9 = arith.constant 1.000000e-07 : f32
    %35 = vector.broadcast %cst_9 : f32 to vector<40x16xf32>
    %36 = arith.maximumf %25, %35 : vector<40x16xf32>
    %cst_10 = arith.constant dense<0.000000e+00> : vector<40xf32>
    %37 = vector.multi_reduction <add>, %36, %cst_10 [1] : vector<40x16xf32> to vector<40xf32>
    %38 = vector.shape_cast %37 : vector<40xf32> to vector<40x1xf32>
    %cst_11 = arith.constant 1.000000e-07 : f32
    %39 = vector.broadcast %cst_11 : f32 to vector<40x1xf32>
    %40 = arith.maximumf %32, %39 : vector<40x1xf32>
    %41 = arith.subf %38, %40 : vector<40x1xf32>
    %cst_12 = arith.constant 9.21034049 : f32
    %42 = vector.broadcast %cst_12 : f32 to vector<40x1xf32>
    %43 = arith.mulf %42, %41 : vector<40x1xf32>
    %cst_13 = arith.constant 1.000000e+00 : f32
    %44 = vector.broadcast %cst_13 : f32 to vector<40x1xf32>
    %45 = arith.mulf %44, %34 : vector<40x1xf32>
    %cst_14 = arith.constant 1.000000e+00 : f32
    %46 = vector.broadcast %cst_14 : f32 to vector<40x1xf32>
    %47 = arith.mulf %46, %43 : vector<40x1xf32>
    %48 = arith.addf %45, %47 : vector<40x1xf32>
    %49 = arith.extui %7 : vector<40x1xi1> to vector<40x1xi32>
    %50 = arith.sitofp %49 : vector<40x1xi32> to vector<40x1xf32>
    %51 = arith.mulf %48, %50 : vector<40x1xf32>
    %52 = vector.shape_cast %51 : vector<40x1xf32> to vector<1x40x1xf32>
    %cst_15 = arith.constant dense<0.000000e+00> : vector<1xf32>
    %53 = vector.multi_reduction <add>, %52, %cst_15 [1, 2] : vector<1x40x1xf32> to vector<1xf32>
    %54 = vector.shape_cast %53 : vector<1xf32> to vector<1x1x1xf32>
    %55 = vector.extract %54[0, 0, 0] : f32 from vector<1x1x1xf32>
    %c0_16 = arith.constant 0 : index
    %c0_17 = arith.constant 0 : index
    %56 = memref.load %arg3[%c0_16, %c0_17] : memref<1x1xf32, #tpu.memory_space<smem>>
    memref.store %55, %arg3[%c0_16, %c0_17] : memref<1x1xf32, #tpu.memory_space<smem>>
    return
  }
  func.func @transform_0(%arg0: i32) -> (i32, i32) {
    %c0_i32 = arith.constant 0 : i32
    %c0_i32_0 = arith.constant 0 : i32
    return %arg0, %c0_i32 : i32, i32
  }
  func.func @transform_1(%arg0: i32) -> (i32, i32) {
    %c0_i32 = arith.constant 0 : i32
    %c0_i32_0 = arith.constant 0 : i32
    return %arg0, %c0_i32 : i32, i32
  }
  func.func @transform_2(%arg0: i32) -> (i32, i32) {
    %c0_i32 = arith.constant 0 : i32
    %c0_i32_0 = arith.constant 0 : i32
    return %arg0, %c0_i32 : i32, i32
  }
}

</mosaic_0001>

<llo_original>
// kernel: tpu_custom_call.1
$region0: #{tpu_custom_call.1}
  #allocation0 [shape = 'u32[]', space=smem, size = 0x4, offset = 0x4, fixed_abs, tag = 'smem constant byte address 0x4 - core index']
  #allocation1 [shape = 'u32[72,128]{1,0:T(1,128)}', space=vmem, size = 0x9000, scoped, tag = 'internal scratch']
  %s0 = inlined_call_operand.vmem [shape: f32[37,16], index: 0, kind: input, shape index: {}]
  %s1 = inlined_call_operand.vmem [shape: s32[37,1], index: 1, kind: input, shape index: {}]
  %s2 = inlined_call_operand.hbm [shape: f32[1,1], index: 2, kind: output, shape index: {}]
  %s3 = sld [smem:[#allocation0]]
  $region18: #{tpu_custom_call.1} parent=0
    _
  %s5 = ssub.s32 1, %s3
  %s6 = scalar_select 0, %s5, %s3
  $region1: #{tpu_custom_call.1} parent=0
    #allocation2 [shape = 'u8[512]{0}', space=smem, size = 0x200, scoped, tag = 'output window, operand 0, single buffered']
    #allocation3 [shape = 's32[1]{0}', space=sflag, size = 0x4, scoped, tag = 'scoped memory for tpu_custom_call.1']
    %7 = vsyncpa [#allocation3], 0
    // Predicated region
    $region2: #{tpu_custom_call.1} parent=1 // pred_check
      _
    $region3: #{tpu_custom_call.1} parent=1 // pred_check_branch
      %9 = sbr.rel (0) target = $region5
    $region4: #{tpu_custom_call.1} parent=1 // pred_region
      _
    $region5: #{tpu_custom_call.1} parent=1 // pred_fallthru
      _
    // Predicated region
    $region6: #{tpu_custom_call.1} parent=1 // pred_check
      _
    $region7: #{tpu_custom_call.1} parent=1 // pred_check_branch
      %11 = sbr.rel (0) target = $region9
    $region8: #{tpu_custom_call.1} parent=1 // pred_region
      _
    $region9: #{tpu_custom_call.1} parent=1 // pred_fallthru
      _
    %v12 = vld [vmem:[%s0] sm:$0xff]
    %v13 = vld [vmem:[%s0 + $0x8] sm:$0xff]
    %v14 = vld [vmem:[%s0 + $0x10] sm:$0xff]
    %v15 = vld [vmem:[%s0 + $0x18] sm:$0xff]
    %v16 = vld [vmem:[%s0 + $0x20] sm:$0xff]
    %v17 = vld [vmem:[%s1] sm:$0xff]
    %v18 = vld [vmem:[%s1 + $0x8] sm:$0xff]
    %v19 = vld [vmem:[%s1 + $0x10] sm:$0xff]
    %v20 = vld [vmem:[%s1 + $0x18] sm:$0xff]
    %v21 = vld [vmem:[%s1 + $0x20] sm:$0xff]
    %v22 = vlaneseq
    %v23 = vshrl.u32 %v22, 7
    %v24 = vadd.s32 %v23, 8
    %v25 = vadd.s32 %v23, 16
    %v26 = vadd.s32 %v23, 24
    %v27 = vadd.s32 %v23, 32
    %s28 = smul.u32 0, 40
    %v29 = vstv %s28
    %v30 = vadd.s32 %v29, %v23
    %v31 = vadd.s32 %v29, %v24
    %v32 = vadd.s32 %v29, %v25
    %v33 = vadd.s32 %v29, %v26
    %v34 = vadd.s32 %v29, %v27
    %vm35 = vcmp.lt.s32.totalorder %v30, 37
    %vm36 = vcmp.lt.s32.totalorder %v31, 37
    %vm37 = vcmp.lt.s32.totalorder %v32, 37
    %vm38 = vcmp.lt.s32.totalorder %v33, 37
    %vm39 = vcmp.lt.s32.totalorder %v34, 37
    %v40 = vsel %vm35, 1, 0
    %v41 = vsel %vm36, 1, 0
    %v42 = vsel %vm37, 1, 0
    %v43 = vsel %vm38, 1, 0
    %v44 = vsel %vm39, 1, 0
    %vm45 = vcmp.eq.s32.totalorder %v40, 1
    %vm46 = vcmp.eq.s32.totalorder %v41, 1
    %vm47 = vcmp.eq.s32.totalorder %v42, 1
    %vm48 = vcmp.eq.s32.totalorder %v43, 1
    %vm49 = vcmp.eq.s32.totalorder %v44, 1
    %v50 = vsel %vm45, %v12, 0.0
    %v51 = vsel %vm46, %v13, 0.0
    %v52 = vsel %vm47, %v14, 0.0
    %v53 = vsel %vm48, %v15, 0.0
    %v54 = vsel %vm49, %v16, 0.0
    %vm55 = vcmask 130048
    %v56 = vsel %vm55, %v50, -inf
    %57 = vmax.xlane.f32.xlu0 %v56
    %v58 = vpop.xlane.xlu0 %57
    %v59 = vsel %vm55, %v51, -inf
    %60 = vmax.xlane.f32.xlu0 %v59
    %v61 = vpop.xlane.xlu0 %60
    %v62 = vsel %vm55, %v52, -inf
    %63 = vmax.xlane.f32.xlu0 %v62
    %v64 = vpop.xlane.xlu0 %63
    %v65 = vsel %vm55, %v53, -inf
    %66 = vmax.xlane.f32.xlu0 %v65
    %v67 = vpop.xlane.xlu0 %66
    %v68 = vsel %vm55, %v54, -inf
    %69 = vmax.xlane.f32.xlu0 %v68
    %v70 = vpop.xlane.xlu0 %69
    %v71 = vsub.f32 %v50, %v58
    %v72 = vsub.f32 %v51, %v61
    %v73 = vsub.f32 %v52, %v64
    %v74 = vsub.f32 %v53, %v67
    %v75 = vsub.f32 %v54, %v70
    %v76 = vmul.f32 %v71, 1.442695
    %v77 = vpow.pop %v76
    %v78 = vmul.f32 %v72, 1.442695
    %v79 = vpow.pop %v78
    %v80 = vmul.f32 %v73, 1.442695
    %v81 = vpow.pop %v80
    %v82 = vmul.f32 %v74, 1.442695
    %v83 = vpow.pop %v82
    %v84 = vmul.f32 %v75, 1.442695
    %v85 = vpow.pop %v84
    %v86 = vsel %vm55, %v77, 0.0
    %87 = vadd.xlane.f32.xlu0 %v86
    %v88 = vpop.xlane.xlu0 %87
    %v89 = vsel %vm55, %v79, 0.0
    %90 = vadd.xlane.f32.xlu0 %v89
    %v91 = vpop.xlane.xlu0 %90
    %v92 = vsel %vm55, %v81, 0.0
    %93 = vadd.xlane.f32.xlu0 %v92
    %v94 = vpop.xlane.xlu0 %93
    %v95 = vsel %vm55, %v83, 0.0
    %96 = vadd.xlane.f32.xlu0 %v95
    %v97 = vpop.xlane.xlu0 %96
    %v98 = vsel %vm55, %v85, 0.0
    %99 = vadd.xlane.f32.xlu0 %v98
    %v100 = vpop.xlane.xlu0 %99
    %v101 = vrcp.pop %v88
    %v102 = vrcp.pop %v91
    %v103 = vrcp.pop %v94
    %v104 = vrcp.pop %v97
    %v105 = vrcp.pop %v100
    %v106 = vmul.f32 %v88, %v101
    %v107 = vmul.f32 %v91, %v102
    %v108 = vmul.f32 %v94, %v103
    %v109 = vmul.f32 %v97, %v104
    %v110 = vmul.f32 %v100, %v105
    %v111 = vsub.f32 2.0, %v106
    %v112 = vsub.f32 2.0, %v107
    %v113 = vsub.f32 2.0, %v108
    %v114 = vsub.f32 2.0, %v109
    %v115 = vsub.f32 2.0, %v110
    %v116 = vmul.f32 %v101, %v111
    %v117 = vmul.f32 %v102, %v112
    %v118 = vmul.f32 %v103, %v113
    %v119 = vmul.f32 %v104, %v114
    %v120 = vmul.f32 %v105, %v115
    %v121 = vmul.f32 %v77, %v116
    %v122 = vmul.f32 %v79, %v117
    %v123 = vmul.f32 %v81, %v118
    %v124 = vmul.f32 %v83, %v119
    %v125 = vmul.f32 %v85, %v120
    %v126 = vlaneseq
    %v127 = vand.u32 %v126, 127
    %128 = vset.pattern.permute.xlu0 0
    %129 = vperm.xlu0 %128, %v17
    %v130 = vpop.permute.xlu0 %129
    %131 = vset.pattern.permute.xlu0 0
    %132 = vperm.xlu0 %131, %v18
    %v133 = vpop.permute.xlu0 %132
    %134 = vset.pattern.permute.xlu0 0
    %135 = vperm.xlu0 %134, %v19
    %v136 = vpop.permute.xlu0 %135
    %137 = vset.pattern.permute.xlu0 0
    %138 = vperm.xlu0 %137, %v20
    %v139 = vpop.permute.xlu0 %138
    %140 = vset.pattern.permute.xlu0 0
    %141 = vperm.xlu0 %140, %v21
    %v142 = vpop.permute.xlu0 %141
    %vm143 = vcmp.eq.s32.totalorder %v127, %v130
    %vm144 = vcmp.eq.s32.totalorder %v127, %v133
    %vm145 = vcmp.eq.s32.totalorder %v127, %v136
    %vm146 = vcmp.eq.s32.totalorder %v127, %v139
    %vm147 = vcmp.eq.s32.totalorder %v127, %v142
    %v148 = vsel %vm143, %v121, 0.0
    %v149 = vsel %vm144, %v122, 0.0
    %v150 = vsel %vm145, %v123, 0.0
    %v151 = vsel %vm146, %v124, 0.0
    %v152 = vsel %vm147, %v125, 0.0
    %v153 = vsel %vm55, %v148, 0.0
    %154 = vadd.xlane.f32.xlu0 %v153
    %v155 = vpop.xlane.xlu0 %154
    %v156 = vsel %vm55, %v149, 0.0
    %157 = vadd.xlane.f32.xlu0 %v156
    %v158 = vpop.xlane.xlu0 %157
    %v159 = vsel %vm55, %v150, 0.0
    %160 = vadd.xlane.f32.xlu0 %v159
    %v161 = vpop.xlane.xlu0 %160
    %v162 = vsel %vm55, %v151, 0.0
    %163 = vadd.xlane.f32.xlu0 %v162
    %v164 = vpop.xlane.xlu0 %163
    %v165 = vsel %vm55, %v152, 0.0
    %166 = vadd.xlane.f32.xlu0 %v165
    %v167 = vpop.xlane.xlu0 %166
    %v168 = vsub.f32 1.0, %v155
    %v169 = vsub.f32 1.0, %v158
    %v170 = vsub.f32 1.0, %v161
    %v171 = vsub.f32 1.0, %v164
    %v172 = vsub.f32 1.0, %v167
    %v173 = vmax.f32 %v121, 1e-07
    %v174 = vmax.f32 %v122, 1e-07
    %v175 = vmax.f32 %v123, 1e-07
    %v176 = vmax.f32 %v124, 1e-07
    %v177 = vmax.f32 %v125, 1e-07
    %v178 = vsel %vm55, %v173, 0.0
    %179 = vadd.xlane.f32.xlu0 %v178
    %v180 = vpop.xlane.xlu0 %179
    %v181 = vsel %vm55, %v174, 0.0
    %182 = vadd.xlane.f32.xlu0 %v181
    %v183 = vpop.xlane.xlu0 %182
    %v184 = vsel %vm55, %v175, 0.0
    %185 = vadd.xlane.f32.xlu0 %v184
    %v186 = vpop.xlane.xlu0 %185
    %v187 = vsel %vm55, %v176, 0.0
    %188 = vadd.xlane.f32.xlu0 %v187
    %v189 = vpop.xlane.xlu0 %188
    %v190 = vsel %vm55, %v177, 0.0
    %191 = vadd.xlane.f32.xlu0 %v190
    %v192 = vpop.xlane.xlu0 %191
    %v193 = vmax.f32 %v155, 1e-07
    %v194 = vmax.f32 %v158, 1e-07
    %v195 = vmax.f32 %v161, 1e-07
    %v196 = vmax.f32 %v164, 1e-07
    %v197 = vmax.f32 %v167, 1e-07
    %v198 = vsub.f32 %v180, %v193
    %v199 = vsub.f32 %v183, %v194
    %v200 = vsub.f32 %v186, %v195
    %v201 = vsub.f32 %v189, %v196
    %v202 = vsub.f32 %v192, %v197
    %v203 = vmul.f32 %v198, 9.2103405
    %v204 = vmul.f32 %v199, 9.2103405
    %v205 = vmul.f32 %v200, 9.2103405
    %v206 = vmul.f32 %v201, 9.2103405
    %v207 = vmul.f32 %v202, 9.2103405
    %v208 = vadd.f32 %v168, %v203
    %v209 = vadd.f32 %v169, %v204
    %v210 = vadd.f32 %v170, %v205
    %v211 = vadd.f32 %v171, %v206
    %v212 = vadd.f32 %v172, %v207
    %v213 = vcvt.s32.f32 %v40
    %v214 = vcvt.s32.f32 %v41
    %v215 = vcvt.s32.f32 %v42
    %v216 = vcvt.s32.f32 %v43
    %v217 = vcvt.s32.f32 %v44
    %v218 = vmul.f32 %v208, %v213
    %v219 = vmul.f32 %v209, %v214
    %v220 = vmul.f32 %v210, %v215
    %v221 = vmul.f32 %v211, %v216
    %v222 = vmul.f32 %v212, %v217
    %vm223 = vcmask 7168
    %v224 = vsel %vm223, %v218, 0.0
    %v225 = vsel %vm223, %v219, 0.0
    %v226 = vadd.f32 %v224, %v225
    %v227 = vsel %vm223, %v220, 0.0
    %v228 = vadd.f32 %v226, %v227
    %v229 = vsel %vm223, %v221, 0.0
    %v230 = vadd.f32 %v228, %v229
    %v231 = vsel %vm223, %v222, 0.0
    %v232 = vadd.f32 %v230, %v231
    %233 = vadd.xlane.f32.xlu0 %v232
    %v234 = vpop.xlane.xlu0 %233
    %v235 = vrot.slane %v234, 4
    %v236 = vadd.f32 %v234, %v235
    %v237 = vrot.slane %v236, 2
    %v238 = vadd.f32 %v236, %v237
    %v239 = vrot.slane %v238, 1
    %v240 = vadd.f32 %v238, %v239
    %s241 = vtos %v240
    %s242 = scalar_lea.smem [#allocation2], 0
    %243 = sst [smem:[%s242]] %s241
    // Predicated region
    $region10: #{tpu_custom_call.1} parent=1 // pred_check
      _
    $region11: #{tpu_custom_call.1} parent=1 // pred_check_branch
      %245 = sbr.rel (0) target = $region13
    $region12: #{tpu_custom_call.1} parent=1 // pred_region
      %247 = vsyncadd [#allocation3], 0
      %s249 = sshll.u32 %s2, 4
      %s250 = int_to_ptr.hbm [resolvable:$true] %s249
      %252 = dma.smem_to_hbm [#allocation2], 16, %s250, [#allocation3]
    $region13: #{tpu_custom_call.1} parent=1 // pred_fallthru
      _
    // Predicated region
    $region14: #{tpu_custom_call.1} parent=1 // pred_check
      _
    $region15: #{tpu_custom_call.1} parent=1 // pred_check_branch
      %254 = sbr.rel (0) target = $region17
    $region16: #{tpu_custom_call.1} parent=1 // pred_region
      %256 = dma.done [#allocation3], 16
    $region17: #{tpu_custom_call.1} parent=1 // pred_fallthru
      _
    %257 = sfence
    %258 = vsyncpa [#allocation3], 1

</llo_original>
